<compile_context>
chip_gen: v7x
topology: tpu7x:2x2x1
jax: 0.10.0
libtpu: 0.0.40
codegen_flags: <defaults>
</compile_context>

<pallas_src>
import functools

import jax
import jax.numpy as jnp
from jax.experimental import pallas as pl
from jax.experimental.pallas import tpu as pltpu

_LANE = 128   # lane width (last dim)


def _cdiv(a, b):
    return -(-a // b)


def _round_up(n, m):
    return ((n + m - 1) // m) * m


def _row_align(dtype):
    # bf16 packs 16 rows per sublane group; f32 packs 8.
    return 16 if jnp.dtype(dtype).itemsize == 2 else 8


@functools.lru_cache(maxsize=None)
def _tpu_defaults():
    """Generation-aware (VMEM budget, default batch tile).

    v5e/v6e: 128 MiB physical VMEM -> ~96 MiB budget; v7x: 64 MiB -> ~48 MiB.
    v5e has 128x128 MXUs -> 128-row tiles; v6e/v7x 256x256 -> 256-row tiles.
    """
    kind = ""
    try:
        kind = jax.devices()[0].device_kind.lower()
    except Exception:
        pass
    if "v7" in kind:
        budget, tile = 48 << 20, 256
    elif "v5 lite" in kind or "v5e" in kind or "v5lite" in kind:
        budget, tile = 96 << 20, 128
    elif "v6" in kind:
        budget, tile = 96 << 20, 256
    else:
        budget, tile = 48 << 20, 256   # unknown chip: stay conservative
    try:  # prefer the exact physical capacity when the query is available
        cap = int(getattr(pltpu.get_tpu_info(), "vmem_capacity_bytes", 0))
        if cap > 0:
            budget = (cap * 3) // 4
    except Exception:
        pass
    return budget, tile


# --------------------------------------------------------------------------- #
# One-time parameter preparation (hoisted out of the per-call forward).
# --------------------------------------------------------------------------- #
def prepare_params(params, *, compute_dtype=jnp.bfloat16):
    """Pad feature dims to 128 lanes, cast W to compute_dtype, keep biases f32.

    Do this ONCE and reuse the result across forward calls; it removes the
    per-call weight re-read / re-write passes over HBM.

    Args:
      params: list of (W, b) with W: [in_features, out_features] (pre-transposed
              vs. PyTorch Linear), b: [1, out_features] (or [out_features]).
      compute_dtype: dtype fed to the MXU (bfloat16 default; float32 exact).
    """
    compute_dtype = jnp.dtype(compute_dtype)
    in_features = params[0][0].shape[0]
    dims = [in_features] + [w.shape[1] for w, _ in params]
    dims_p = [_round_up(d, _LANE) for d in dims]

    padded = []
    for li, (w, b) in enumerate(params):
        din, dout = w.shape
        din_p, dout_p = dims_p[li], dims_p[li + 1]
        w_p = jnp.zeros((din_p, dout_p), compute_dtype)
        w_p = w_p.at[:din, :dout].set(w.astype(compute_dtype))
        b2 = jnp.reshape(b, (1, -1)).astype(jnp.float32)
        b_p = jnp.zeros((1, dout_p), jnp.float32).at[:, :dout].set(b2)
        padded.append((w_p, b_p))

    return dict(weights=padded, dims=dims, dims_p=dims_p,
                compute_dtype=compute_dtype)


# --------------------------------------------------------------------------- #
# Kernels
# --------------------------------------------------------------------------- #
def _fused_mlp_kernel(n_layers, x_ref, *refs):
    """Fully fused MLP forward on one batch tile.

    refs = (w0_ref, b0_ref, ..., w{L-1}_ref, b{L-1}_ref, o_ref).
    Weights arrive in the compute dtype; x may arrive f32 and is cast in-kernel
    (VPU cast hidden under the MXU).  Accumulation is f32
    (preferred_element_type); bias-add and ReLU run in f32 (v5e has no bf16
    VPU path); activations are cast back to the compute dtype between layers.
    """
    o_ref = refs[-1]
    prefs = refs[:-1]
    compute_dtype = prefs[0].dtype

    h = x_ref[...].astype(compute_dtype)
    for layer in range(n_layers):
        w_ref = prefs[2 * layer]
        b_ref = prefs[2 * layer + 1]
        acc = jnp.dot(h, w_ref[...], preferred_element_type=jnp.float32)
        acc = acc + b_ref[...]
        if layer < n_layers - 1:            # hidden layers: ReLU; final: identity
            h = jnp.maximum(acc, 0.0).astype(compute_dtype)
        else:
            h = acc
    o_ref[...] = h.astype(o_ref.dtype)


def _layer_kernel(apply_relu, x_ref, w_ref, b_ref, o_ref, acc_ref):
    """One tiled Linear (+ optional ReLU) with K-axis accumulation (P3)."""
    @pl.when(pl.program_id(2) == 0)
    def _():
        acc_ref[...] = jnp.zeros_like(acc_ref)

    acc_ref[...] += jnp.dot(x_ref[...], w_ref[...],
                            preferred_element_type=jnp.float32)

    @pl.when(pl.program_id(2) == pl.num_programs(2) - 1)
    def _():
        r = acc_ref[...] + b_ref[...]       # bias-add / ReLU in f32
        if apply_relu:
            r = jnp.maximum(r, 0.0)
        o_ref[...] = r.astype(o_ref.dtype)


def _tiled_layer(x_p, w_p, b_p, *, apply_relu, out_dtype, tm):
    """Weight-streaming layer: weight tiles are pipelined HBM->VMEM by the
    BlockSpec machinery, overlapping DMA with the MXU work."""
    M, K = x_p.shape
    K2, N = w_p.shape
    assert K == K2
    tk = max(t for t in (512, 256, 128) if K % t == 0)
    tn = max(t for t in (512, 256, 128) if N % t == 0)
    grid = (M // tm, N // tn, K // tk)
    return pl.pallas_call(
        functools.partial(_layer_kernel, apply_relu),
        out_shape=jax.ShapeDtypeStruct((M, N), out_dtype),
        grid=grid,
        in_specs=[pl.BlockSpec((tm, tk), lambda i, j, k: (i, k)),
                  pl.BlockSpec((tk, tn), lambda i, j, k: (k, j)),
                  pl.BlockSpec((1, tn), lambda i, j, k: (0, j))],
        out_specs=pl.BlockSpec((tm, tn), lambda i, j, k: (i, j)),
        scratch_shapes=[pltpu.VMEM((tm, tn), jnp.float32)],
        compiler_params=pltpu.CompilerParams(
            dimension_semantics=("parallel", "parallel", "arbitrary")),
    )(x_p, w_p, b_p)


# --------------------------------------------------------------------------- #
# VMEM budgeting
# --------------------------------------------------------------------------- #
def _estimate_vmem_bytes(dims_p, rows, compute_itemsize, x_itemsize,
                         out_itemsize, gridded):
    """Resident-VMEM estimate.  In the gridded path the auto-pipeliner
    double-buffers EVERY BlockSpec input -- including the constant-index
    weights -- so count those 2x (perf-review correctness concern)."""
    n_buf = 2 if gridded else 1
    w_bytes = sum(
        n_buf * (dims_p[i] * dims_p[i + 1] * compute_itemsize + dims_p[i + 1] * 4)
        for i in range(len(dims_p) - 1))
    io_bytes = n_buf * rows * (dims_p[0] * x_itemsize + dims_p[-1] * out_itemsize)
    act_bytes = 2 * rows * max(dims_p) * 4   # f32 accumulator temporaries
    return w_bytes + io_bytes + act_bytes


# --------------------------------------------------------------------------- #
# Forward wrappers
# --------------------------------------------------------------------------- #
def _layered_forward(x, prepped, *, out_dtype, tile_b):
    """Fallback for configs whose resident weights exceed the VMEM budget:
    one pipelined tiled matmul per layer (weights streamed from HBM).
    # TODO(synk): a fully fused streaming variant (memory_space=pl.ANY weights
    # + manual double-buffered make_async_copy) would also avoid the HBM
    # round-trip of intermediate activations between layers."""
    weights = prepped["weights"]
    dims_p = prepped["dims_p"]
    compute_dtype = prepped["compute_dtype"]
    in_features = prepped["dims"][0]
    batch = x.shape[0]

    row_align = _row_align(compute_dtype)
    tm = min(_round_up(batch, row_align), _round_up(tile_b, row_align))
    batch_p = _round_up(batch, tm)

    h = jnp.zeros((batch_p, dims_p[0]), compute_dtype)
    h = h.at[:batch, :in_features].set(x.astype(compute_dtype))

    n_layers = len(weights)
    for li, (w_p, b_p) in enumerate(weights):
        last = li == n_layers - 1
        h = _tiled_layer(h, w_p, b_p, apply_relu=not last,
                         out_dtype=(out_dtype if last else compute_dtype), tm=tm)
    return h[:batch]


def flexible_mlp_forward(x, prepped, *, tile_b=None, out_dtype=jnp.float32,
                         vmem_budget_bytes=None):
    """Fused FlexibleMLP forward (Linear -> ReLU ... -> Linear).

    Args:
      x:        [batch, input_size] float array.
      prepped:  output of prepare_params() (built once, reused across calls).
      tile_b:   batch tile for large batches; default is generation-aware
                (128 on v5e, 256 on v6e/v7x).
      out_dtype: output dtype (float32 default, matching the PyTorch module;
                 bf16 halves writeback if the caller tolerates it).
      vmem_budget_bytes: override the generation-aware resident-VMEM budget.
    Returns:
      [batch, output_size] array of out_dtype.
    """
    weights = prepped["weights"]
    dims = prepped["dims"]
    dims_p = prepped["dims_p"]
    compute_dtype = prepped["compute_dtype"]
    in_features, out_features = dims[0], dims[-1]
    n_layers = len(weights)

    batch = x.shape[0]
    assert x.shape[1] == in_features, (x.shape, in_features)
    out_dtype = jnp.dtype(out_dtype)

    budget_default, tile_default = _tpu_defaults()
    if vmem_budget_bytes is None:
        vmem_budget_bytes = budget_default
    row_align = _row_align(compute_dtype)
    tile_b = _round_up(tile_default if tile_b is None else tile_b, row_align)

    gridded = batch > tile_b
    if gridded:
        # Balance the tile so a batch just over a tile multiple doesn't pad up
        # by nearly a full tile, and target >= 4 tiles (>= 2 grid steps per
        # TensorCore on v7x) so tile DMAs pipeline under the MXU, while keeping
        # tiles >= 128 rows (MXU M tile) and <= tile_b.
        n_tiles = max(_cdiv(batch, tile_b), min(4, max(1, batch // 128)))
        tile = _round_up(_cdiv(batch, n_tiles), row_align)
        n_tiles = _cdiv(batch, tile)
        batch_p = n_tiles * tile
        rows = tile
    else:
        tile = batch_p = _round_up(batch, row_align)
        rows = batch_p

    needs_pad = (batch_p != batch) or (dims_p[0] != in_features)
    x_itemsize = (compute_dtype.itemsize if needs_pad
                  else jnp.dtype(x.dtype).itemsize)

    est = _estimate_vmem_bytes(dims_p, rows, compute_dtype.itemsize,
                               x_itemsize, out_dtype.itemsize, gridded)
    if est > vmem_budget_bytes:
        # Weights do not fit resident: stream them per layer instead of failing.
        out = _layered_forward(x, prepped, out_dtype=out_dtype, tile_b=tile_b)
        return out[:, :out_features]

    # Only materialize a padded copy of x when real padding is required; when
    # it is, pad + cast in a single pass.  Otherwise pass x as-is and let the
    # in-kernel astype do the cast.
    if needs_pad:
        x_in = jnp.zeros((batch_p, dims_p[0]), compute_dtype)
        x_in = x_in.at[:batch, :in_features].set(x.astype(compute_dtype))
    else:
        x_in = x

    flat_inputs = [x_in]
    for w_p, b_p in weights:
        flat_inputs.append(w_p)
        flat_inputs.append(b_p)

    cp_kwargs = {}
    if gridded:
        cp_kwargs["dimension_semantics"] = ("parallel",)
    if est > 16 * 1024 * 1024:   # above the smallest default scoped-VMEM limit
        cp_kwargs["vmem_limit_bytes"] = int(min(2 * est, vmem_budget_bytes))
    compiler_params = pltpu.CompilerParams(**cp_kwargs) if cp_kwargs else None

    vmem = pltpu.MemorySpace.VMEM
    call_kwargs = dict(
        out_shape=jax.ShapeDtypeStruct((batch_p, dims_p[-1]), out_dtype))
    if not gridded:
        # Single un-gridded invocation: full-extent VMEM blocks, no pipeline
        # prologue/epilogue, no dimension_semantics.
        call_kwargs["in_specs"] = [pl.BlockSpec(memory_space=vmem)
                                   for _ in flat_inputs]
        call_kwargs["out_specs"] = pl.BlockSpec(memory_space=vmem)
    else:
        # Tile over batch; weights / biases use constant index_maps so they stay
        # resident, x / out tiles are pipelined.
        in_specs = [pl.BlockSpec((tile, dims_p[0]), lambda i: (i, 0))]
        for li in range(n_layers):
            din_p, dout_p = dims_p[li], dims_p[li + 1]
            in_specs.append(pl.BlockSpec((din_p, dout_p), lambda i: (0, 0)))
            in_specs.append(pl.BlockSpec((1, dout_p), lambda i: (0, 0)))
        call_kwargs["in_specs"] = in_specs
        call_kwargs["out_specs"] = pl.BlockSpec((tile, dims_p[-1]),
                                                lambda i: (i, 0))
        call_kwargs["grid"] = (batch_p // tile,)
    if compiler_params is not None:
        call_kwargs["compiler_params"] = compiler_params

    out_p = pl.pallas_call(functools.partial(_fused_mlp_kernel, n_layers),
                           **call_kwargs)(*flat_inputs)
    return out_p[:batch, :out_features]


# --------------------------------------------------------------------------- #
# Init + reference
# --------------------------------------------------------------------------- #
def init_flexible_mlp_params(key, depth, widths, input_size, output_size):
    """Parameter init mirroring nn.Linear shapes of FlexibleMLP.

    PyTorch Linear(i, o) has weight [o, i]; we store the transpose [i, o] plus
    bias [1, o].  Init is uniform(-1/sqrt(fan_in), 1/sqrt(fan_in))."""
    assert len(widths) == depth
    dims = [input_size] + list(widths) + [output_size]
    params = []
    for i in range(len(dims) - 1):
        fan_in, fan_out = dims[i], dims[i + 1]
        key, kw, kb = jax.random.split(key, 3)
        bound = 1.0 / jnp.sqrt(jnp.float32(fan_in))
        w = jax.random.uniform(kw, (fan_in, fan_out), jnp.float32, -bound, bound)
        b = jax.random.uniform(kb, (1, fan_out), jnp.float32, -bound, bound)
        params.append((w, b))
    return params


def _reference_forward(x, params):
    h = x
    n = len(params)
    for i, (w, b) in enumerate(params):
        h = h @ w + b
        if i < n - 1:
            h = jnp.maximum(h, 0.0)
    return h


if __name__ == "__main__":
    # Module config: FlexibleMLP(depth=2, widths=[32, 32], input_size=16, output_size=8)
    depth, widths, input_size, output_size = 2, [32, 32], 16, 8

    key = jax.random.PRNGKey(0)
    key, kx_small, kx_big, kx_al, kp, kp_al = jax.random.split(key, 6)
    params = init_flexible_mlp_params(kp, depth, widths, input_size, output_size)

    # One-time parameter preparation (padding + cast hoisted out of forward).
    prepped_bf16 = prepare_params(params, compute_dtype=jnp.bfloat16)
    prepped_f32 = prepare_params(params, compute_dtype=jnp.float32)

    # --- tiny batch: un-gridded fused path, bf16 MXU, f32 accumulation -------
    x_small = jax.random.normal(kx_small, (8, input_size), jnp.float32)
    ref_small = _reference_forward(x_small, params)
    out_bf16 = jax.block_until_ready(flexible_mlp_forward(x_small, prepped_bf16))
    assert out_bf16.shape == (8, output_size)
    assert jnp.allclose(out_bf16, ref_small, atol=1e-1, rtol=1e-1)

    # --- same path in f32 compute: numerically exact check -------------------
    out_f32 = jax.block_until_ready(flexible_mlp_forward(x_small, prepped_f32))
    assert jnp.allclose(out_f32, ref_small, atol=1e-5, rtol=1e-5)

    # --- larger batch: batch-tiled "parallel" fused path (>= 4 tiles) --------
    x_big = jax.random.normal(kx_big, (512, input_size), jnp.float32)
    ref_big = _reference_forward(x_big, params)
    out_big = jax.block_until_ready(flexible_mlp_forward(x_big, prepped_bf16))
    assert out_big.shape == (512, output_size)
    assert jnp.allclose(out_big, ref_big, atol=1e-1, rtol=1e-1)

    # --- force the weight-streaming (layered) fallback path -------------------
    out_stream = jax.block_until_ready(
        flexible_mlp_forward(x_big, prepped_bf16, vmem_budget_bytes=1))
    assert out_stream.shape == (512, output_size)
    assert jnp.allclose(out_stream, ref_big, atol=1e-1, rtol=1e-1)

    # --- already lane/sublane-aligned input: no wrapper pad, in-kernel cast ---
    params_al = init_flexible_mlp_params(kp_al, 1, [128], 128, 128)
    prepped_al = prepare_params(params_al, compute_dtype=jnp.bfloat16)
    x_al = jax.random.normal(kx_al, (64, 128), jnp.float32)
    out_al = jax.block_until_ready(flexible_mlp_forward(x_al, prepped_al))
    ref_al = _reference_forward(x_al, params_al)
    assert out_al.shape == (64, 128)
    assert jnp.allclose(out_al, ref_al, atol=1e-1, rtol=1e-1)

    print("KERNEL_OK")
</pallas_src>

<mosaic_0001>
module attributes {stable_mosaic.version = 11 : i64} {
  func.func @_fused_mlp_kernel(%arg0: memref<16x128xbf16, #tpu.memory_space<vmem>>, %arg1: memref<128x128xbf16, #tpu.memory_space<vmem>>, %arg2: memref<1x128xf32, #tpu.memory_space<vmem>>, %arg3: memref<128x128xbf16, #tpu.memory_space<vmem>>, %arg4: memref<1x128xf32, #tpu.memory_space<vmem>>, %arg5: memref<128x128xbf16, #tpu.memory_space<vmem>>, %arg6: memref<1x128xf32, #tpu.memory_space<vmem>>, %arg7: memref<16x128xf32, #tpu.memory_space<vmem>>) attributes {dimension_semantics = [], scalar_prefetch = 0 : i64, scratch_operands = 0 : i64, tpu.core_type = #tpu.core_type<tc>} {
    %c0 = arith.constant 0 : index
    %c0_0 = arith.constant 0 : index
    %0 = vector.load %arg0[%c0, %c0_0] : memref<16x128xbf16, #tpu.memory_space<vmem>>, vector<16x128xbf16>
    %c0_1 = arith.constant 0 : index
    %c0_2 = arith.constant 0 : index
    %1 = vector.load %arg1[%c0_1, %c0_2] : memref<128x128xbf16, #tpu.memory_space<vmem>>, vector<128x128xbf16>
    %cst = arith.constant dense<0.000000e+00> : vector<16x128xf32>
    %2 = tpu.matmul %0, %1, %cst {dimension_numbers = #tpu.dot_dimension_numbers<[1], [0], [0], [1], [0, 0, 1, 1], [], []>} : vector<16x128xbf16>, vector<128x128xbf16>, vector<16x128xf32> -> vector<16x128xf32>
    %c0_3 = arith.constant 0 : index
    %c0_4 = arith.constant 0 : index
    %3 = vector.load %arg2[%c0_3, %c0_4] : memref<1x128xf32, #tpu.memory_space<vmem>>, vector<1x128xf32>
    %4 = vector.broadcast %3 : vector<1x128xf32> to vector<16x128xf32>
    %5 = arith.addf %2, %4 : vector<16x128xf32>
    %cst_5 = arith.constant 0.000000e+00 : f32
    %6 = vector.broadcast %cst_5 : f32 to vector<16x128xf32>
    %7 = arith.maximumf %5, %6 : vector<16x128xf32>
    %8 = arith.truncf %7 : vector<16x128xf32> to vector<16x128xbf16>
    %c0_6 = arith.constant 0 : index
    %c0_7 = arith.constant 0 : index
    %9 = vector.load %arg3[%c0_6, %c0_7] : memref<128x128xbf16, #tpu.memory_space<vmem>>, vector<128x128xbf16>
    %cst_8 = arith.constant dense<0.000000e+00> : vector<16x128xf32>
    %10 = tpu.matmul %8, %9, %cst_8 {dimension_numbers = #tpu.dot_dimension_numbers<[1], [0], [0], [1], [0, 0, 1, 1], [], []>} : vector<16x128xbf16>, vector<128x128xbf16>, vector<16x128xf32> -> vector<16x128xf32>
    %c0_9 = arith.constant 0 : index
    %c0_10 = arith.constant 0 : index
    %11 = vector.load %arg4[%c0_9, %c0_10] : memref<1x128xf32, #tpu.memory_space<vmem>>, vector<1x128xf32>
    %12 = vector.broadcast %11 : vector<1x128xf32> to vector<16x128xf32>
    %13 = arith.addf %10, %12 : vector<16x128xf32>
    %cst_11 = arith.constant 0.000000e+00 : f32
    %14 = vector.broadcast %cst_11 : f32 to vector<16x128xf32>
    %15 = arith.maximumf %13, %14 : vector<16x128xf32>
    %16 = arith.truncf %15 : vector<16x128xf32> to vector<16x128xbf16>
    %c0_12 = arith.constant 0 : index
    %c0_13 = arith.constant 0 : index
    %17 = vector.load %arg5[%c0_12, %c0_13] : memref<128x128xbf16, #tpu.memory_space<vmem>>, vector<128x128xbf16>
    %cst_14 = arith.constant dense<0.000000e+00> : vector<16x128xf32>
    %18 = tpu.matmul %16, %17, %cst_14 {dimension_numbers = #tpu.dot_dimension_numbers<[1], [0], [0], [1], [0, 0, 1, 1], [], []>} : vector<16x128xbf16>, vector<128x128xbf16>, vector<16x128xf32> -> vector<16x128xf32>
    %c0_15 = arith.constant 0 : index
    %c0_16 = arith.constant 0 : index
    %19 = vector.load %arg6[%c0_15, %c0_16] : memref<1x128xf32, #tpu.memory_space<vmem>>, vector<1x128xf32>
    %20 = vector.broadcast %19 : vector<1x128xf32> to vector<16x128xf32>
    %21 = arith.addf %18, %20 : vector<16x128xf32>
    %c0_17 = arith.constant 0 : index
    %c0_18 = arith.constant 0 : index
    %22 = vector.load %arg7[%c0_17, %c0_18] : memref<16x128xf32, #tpu.memory_space<vmem>>, vector<16x128xf32>
    tpu.vector_store %arg7[%c0_17, %c0_18], %21 {strides = array<i32>} : memref<16x128xf32, #tpu.memory_space<vmem>>, vector<16x128xf32>,
    return
  }
}

</mosaic_0001>

<llo_original>
// kernel: tpu_custom_call.1
$region0: #{tpu_custom_call.1}
  #allocation0 [shape = 'u32[]', space=smem, size = 0x4, offset = 0x4, fixed_abs, tag = 'smem constant byte address 0x4 - core index']
  #allocation1 [shape = 'u32[144,128]{1,0:T(1,128)}', space=vmem, size = 0x12000, scoped, tag = 'internal scratch']
  %s0 = inlined_call_operand.hbm [shape: bf16[16,128], index: 0, kind: input, shape index: {}]
  %s1 = inlined_call_operand.hbm [shape: bf16[128,128], index: 1, kind: input, shape index: {}]
  %s2 = inlined_call_operand.vmem [shape: f32[1,128], index: 2, kind: input, shape index: {}]
  %s3 = inlined_call_operand.hbm [shape: bf16[128,128], index: 3, kind: input, shape index: {}]
  %s4 = inlined_call_operand.vmem [shape: f32[1,128], index: 4, kind: input, shape index: {}]
  %s5 = inlined_call_operand.hbm [shape: bf16[128,128], index: 5, kind: input, shape index: {}]
  %s6 = inlined_call_operand.vmem [shape: f32[1,128], index: 6, kind: input, shape index: {}]
  %s7 = inlined_call_operand.hbm [shape: f32[16,128], index: 7, kind: output, shape index: {}]
  %s8 = sld [smem:[#allocation0]]
  $region54: #{tpu_custom_call.1} parent=0
    _
  %s10 = ssub.s32 1, %s8
  %s11 = scalar_select 0, %s10, %s8
  $region1: #{tpu_custom_call.1} parent=0
    #allocation2 [shape = 'u8[4096]{0}', space=vmem, size = 0x1000, scoped, tag = 'input window, operand 0, single buffered']
    #allocation3 [shape = 's32[1]{0}', space=sflag, size = 0x4, scoped, tag = 'scoped memory for tpu_custom_call.1']
    #allocation4 [shape = 's32[1]{0}', space=sflag, size = 0x4, scoped, tag = 'scoped memory for tpu_custom_call.1']
    #allocation5 [shape = 'u8[32768]{0}', space=vmem, size = 0x8000, scoped, tag = 'input window, operand 1, single buffered']
    #allocation6 [shape = 's32[1]{0}', space=sflag, size = 0x4, scoped, tag = 'scoped memory for tpu_custom_call.1']
    #allocation7 [shape = 'u8[32768]{0}', space=vmem, size = 0x8000, scoped, tag = 'input window, operand 3, single buffered']
    #allocation8 [shape = 'u8[32768]{0}', space=vmem, size = 0x8000, scoped, tag = 'input window, operand 5, single buffered']
    #allocation9 [shape = 's32[1]{0}', space=sflag, size = 0x4, scoped, tag = 'scoped memory for tpu_custom_call.1']
    #allocation10 [shape = 'u8[8192]{0}', space=vmem, size = 0x2000, scoped, tag = 'output window, operand 0, single buffered']
    %12 = vsyncpa [#allocation3], 0
    %13 = vsyncpa [#allocation6], 0
    %14 = vsyncpa [#allocation9], 0
    %15 = vsyncpa [#allocation4], 0
    // Predicated region
    $region2: #{tpu_custom_call.1} parent=1 // pred_check
      _
    $region3: #{tpu_custom_call.1} parent=1 // pred_check_branch
      %17 = sbr.rel (0) target = $region5
    $region4: #{tpu_custom_call.1} parent=1 // pred_region
      %s19 = ssub.s32 128, 128
      %20 = vsyncadd [#allocation3], %s19
      %s21 = sshll.u32 [#allocation2], 4
      %s22 = int_to_ptr.vmem [resolvable:$true] %s21
      %27 = dma.hbm_to_vmem [thread:$0]  %s0, 128, %s22, [#allocation3], 64, 64, 4
    $region5: #{tpu_custom_call.1} parent=1 // pred_fallthru
      _
    // Predicated region
    $region6: #{tpu_custom_call.1} parent=1 // pred_check
      _
    $region7: #{tpu_custom_call.1} parent=1 // pred_check_branch
      %29 = sbr.rel (0) target = $region9
    $region8: #{tpu_custom_call.1} parent=1 // pred_region
      %s31 = ssub.s32 1024, 1024
      %32 = vsyncadd [#allocation6], %s31
      %s33 = sshll.u32 [#allocation5], 4
      %s34 = int_to_ptr.vmem [resolvable:$true] %s33
      %39 = dma.hbm_to_vmem [thread:$0]  %s1, 1024, %s34, [#allocation6], 64, 64, 4
    $region9: #{tpu_custom_call.1} parent=1 // pred_fallthru
      _
    // Predicated region
    $region10: #{tpu_custom_call.1} parent=1 // pred_check
      _
    $region11: #{tpu_custom_call.1} parent=1 // pred_check_branch
      %41 = sbr.rel (0) target = $region13
    $region12: #{tpu_custom_call.1} parent=1 // pred_region
      _
    $region13: #{tpu_custom_call.1} parent=1 // pred_fallthru
      _
    // Predicated region
    $region14: #{tpu_custom_call.1} parent=1 // pred_check
      _
    $region15: #{tpu_custom_call.1} parent=1 // pred_check_branch
      %43 = sbr.rel (0) target = $region17
    $region16: #{tpu_custom_call.1} parent=1 // pred_region
      %s45 = ssub.s32 1024, 1024
      %46 = vsyncadd [#allocation6], %s45
      %s47 = sshll.u32 [#allocation7], 4
      %s48 = int_to_ptr.vmem [resolvable:$true] %s47
      %53 = dma.hbm_to_vmem [thread:$0]  %s3, 1024, %s48, [#allocation6], 64, 64, 4
    $region17: #{tpu_custom_call.1} parent=1 // pred_fallthru
      _
    // Predicated region
    $region18: #{tpu_custom_call.1} parent=1 // pred_check
      _
    $region19: #{tpu_custom_call.1} parent=1 // pred_check_branch
      %55 = sbr.rel (0) target = $region21
    $region20: #{tpu_custom_call.1} parent=1 // pred_region
      _
    $region21: #{tpu_custom_call.1} parent=1 // pred_fallthru
      _
    // Predicated region
    $region22: #{tpu_custom_call.1} parent=1 // pred_check
      _
    $region23: #{tpu_custom_call.1} parent=1 // pred_check_branch
      %57 = sbr.rel (0) target = $region25
    $region24: #{tpu_custom_call.1} parent=1 // pred_region
      %s59 = ssub.s32 1024, 1024
      %60 = vsyncadd [#allocation9], %s59
      %s61 = sshll.u32 [#allocation8], 4
      %s62 = int_to_ptr.vmem [resolvable:$true] %s61
      %67 = dma.hbm_to_vmem [thread:$0]  %s5, 1024, %s62, [#allocation9], 64, 64, 4
    $region25: #{tpu_custom_call.1} parent=1 // pred_fallthru
      _
    // Predicated region
    $region26: #{tpu_custom_call.1} parent=1 // pred_check
      _
    $region27: #{tpu_custom_call.1} parent=1 // pred_check_branch
      %69 = sbr.rel (0) target = $region29
    $region28: #{tpu_custom_call.1} parent=1 // pred_region
      _
    $region29: #{tpu_custom_call.1} parent=1 // pred_fallthru
      _
    // Predicated region
    $region30: #{tpu_custom_call.1} parent=1 // pred_check
      _
    $region31: #{tpu_custom_call.1} parent=1 // pred_check_branch
      %71 = sbr.rel (0) target = $region33
    $region32: #{tpu_custom_call.1} parent=1 // pred_region
      %72 = dma.done [#allocation3], 128
    $region33: #{tpu_custom_call.1} parent=1 // pred_fallthru
      _
    // Predicated region
    $region34: #{tpu_custom_call.1} parent=1 // pred_check
      _
    $region35: #{tpu_custom_call.1} parent=1 // pred_check_branch
      %74 = sbr.rel (0) target = $region37
    $region36: #{tpu_custom_call.1} parent=1 // pred_region
      %75 = dma.done [#allocation6], 1024
    $region37: #{tpu_custom_call.1} parent=1 // pred_fallthru
      _
    // Predicated region
    $region38: #{tpu_custom_call.1} parent=1 // pred_check
      _
    $region39: #{tpu_custom_call.1} parent=1 // pred_check_branch
      %77 = sbr.rel (0) target = $region41
    $region40: #{tpu_custom_call.1} parent=1 // pred_region
      %78 = dma.done [#allocation6], 1024
    $region41: #{tpu_custom_call.1} parent=1 // pred_fallthru
      _
    // Predicated region
    $region42: #{tpu_custom_call.1} parent=1 // pred_check
      _
    $region43: #{tpu_custom_call.1} parent=1 // pred_check_branch
      %80 = sbr.rel (0) target = $region45
    $region44: #{tpu_custom_call.1} parent=1 // pred_region
      %81 = dma.done [#allocation9], 1024
    $region45: #{tpu_custom_call.1} parent=1 // pred_fallthru
      _
    %v83 = vld [vmem:[#allocation2] sm:$0xf]
    %v84 = vld [vmem:[#allocation2 + $0x4] sm:$0xf]
    %v85 = vld [vmem:[#allocation5] sm:$0xf]
    %v86 = vld [vmem:[#allocation5 + $0x4] sm:$0xf]
    %v87 = vld [vmem:[#allocation5 + $0x8] sm:$0xf]
    %v88 = vld [vmem:[#allocation5 + $0xc] sm:$0xf]
    %v89 = vld [vmem:[#allocation5 + $0x10] sm:$0xf]
    %v90 = vld [vmem:[#allocation5 + $0x14] sm:$0xf]
    %v91 = vld [vmem:[#allocation5 + $0x18] sm:$0xf]
    %v92 = vld [vmem:[#allocation5 + $0x1c] sm:$0xf]
    %v93 = vld [vmem:[#allocation5 + $0x20] sm:$0xf]
    %v94 = vld [vmem:[#allocation5 + $0x24] sm:$0xf]
    %v95 = vld [vmem:[#allocation5 + $0x28] sm:$0xf]
    %v96 = vld [vmem:[#allocation5 + $0x2c] sm:$0xf]
    %v97 = vld [vmem:[#allocation5 + $0x30] sm:$0xf]
    %v98 = vld [vmem:[#allocation5 + $0x34] sm:$0xf]
    %v99 = vld [vmem:[#allocation5 + $0x38] sm:$0xf]
    %v100 = vld [vmem:[#allocation5 + $0x3c] sm:$0xf]
    %v101 = vld [vmem:[%s2] sm:$0x1]
    %v103 = vlaneseq
    %v104 = vshrl.u32 %v103, 7
    %v105 = vsub.s32 0, %v104
    %v106 = vrot.slane %v101, %v105
    %v110 = vunpack.c.l.b16 %v83
    %v111 = vunpack.c.l.b16 %v84
    %v112 = vpack.c.b16 %v111, %v110
    %v130 = vunpack.c.l.b16 %v85
    %v131 = vunpack.c.l.b16 %v86
    %v132 = vunpack.c.l.b16 %v87
    %v133 = vunpack.c.l.b16 %v88
    %v134 = vunpack.c.l.b16 %v89
    %v135 = vunpack.c.l.b16 %v90
    %v136 = vunpack.c.l.b16 %v91
    %v137 = vunpack.c.l.b16 %v92
    %v138 = vunpack.c.l.b16 %v93
    %v139 = vunpack.c.l.b16 %v94
    %v140 = vunpack.c.l.b16 %v95
    %v141 = vunpack.c.l.b16 %v96
    %v142 = vunpack.c.l.b16 %v97
    %v143 = vunpack.c.l.b16 %v98
    %v144 = vunpack.c.l.b16 %v99
    %v145 = vunpack.c.l.b16 %v100
    %v146 = vpack.c.b16 %v131, %v130
    %v147 = vpack.c.b16 %v133, %v132
    %v148 = vpack.c.b16 %v135, %v134
    %v149 = vpack.c.b16 %v137, %v136
    %v150 = vpack.c.b16 %v139, %v138
    %v151 = vpack.c.b16 %v141, %v140
    %v152 = vpack.c.b16 %v143, %v142
    %v153 = vpack.c.b16 %v145, %v144
    %162 = vmatprep.subr.bf16.mxu0 0
    %163 = vmatpush1.bf16.msra.mxu0 %v146
    %164 = vmatprep.subr.bf16.mxu0 0
    %165 = vmatpush1.bf16.msra.mxu0 %v147
    %166 = vmatprep.subr.bf16.mxu0 0
    %167 = vmatpush1.bf16.msra.mxu0 %v148
    %168 = vmatprep.subr.bf16.mxu0 0
    %169 = vmatpush1.bf16.msra.mxu0 %v149
    %170 = vmatprep.subr.bf16.mxu0 0
    %171 = vmatpush1.bf16.msra.mxu0 %v150
    %172 = vmatprep.subr.bf16.mxu0 0
    %173 = vmatpush1.bf16.msra.mxu0 %v151
    %174 = vmatprep.subr.bf16.mxu0 0
    %175 = vmatpush1.bf16.msra.mxu0 %v152
    %176 = vmatprep.subr.bf16.mxu0 0
    %177 = vmatpush1.bf16.msra.mxu0 %v153
    %178 = vmatprep.subr.bf16.mxu0 0
    %179 = vmatpush1.bf16.msra.mxu0 0
    %180 = vmatprep.subr.bf16.mxu0 0
    %181 = vmatpush1.bf16.msra.mxu0 0
    %182 = vmatprep.subr.bf16.mxu0 0
    %183 = vmatpush1.bf16.msra.mxu0 0
    %184 = vmatprep.subr.bf16.mxu0 0
    %185 = vmatpush1.bf16.msra.mxu0 0
    %186 = vmatprep.subr.bf16.mxu0 0
    %187 = vmatpush1.bf16.msra.mxu0 0
    %188 = vmatprep.subr.bf16.mxu0 0
    %189 = vmatpush1.bf16.msra.mxu0 0
    %190 = vmatprep.subr.bf16.mxu0 0
    %191 = vmatpush1.bf16.msra.mxu0 0
    %192 = vmatprep.subr.bf16.mxu0 0
    %193 = vmatpush1.bf16.msra.mxu0 0
    %194 = vmatprep.mubr.bf16.mxu0 0
    %195 = vmatmul.mubr.bf16.gmra.mrb[0].mxu0 %v112
    %v196 = vpop.f32.mrb[0].mxu0
    %v197 = vadd.f32 %v106, %v196
    %v198 = vpop.f32.mrb[0].mxu0
    %v199 = vpop.f32.mrb[0].mxu0
    %v200 = vadd.f32 %v106, %v199
    %v201 = vpop.f32.mrb[0].mxu0
    %202 = vdwg.mxu0
    %v203 = vmax.f32 %v197, 0.0
    %v204 = vmax.f32 %v200, 0.0
    %v205 = vpack.c.bf16 %v204, %v203
    %v206 = vld [vmem:[#allocation7] sm:$0xf]
    %v207 = vld [vmem:[#allocation7 + $0x4] sm:$0xf]
    %v208 = vld [vmem:[#allocation7 + $0x8] sm:$0xf]
    %v209 = vld [vmem:[#allocation7 + $0xc] sm:$0xf]
    %v210 = vld [vmem:[#allocation7 + $0x10] sm:$0xf]
    %v211 = vld [vmem:[#allocation7 + $0x14] sm:$0xf]
    %v212 = vld [vmem:[#allocation7 + $0x18] sm:$0xf]
    %v213 = vld [vmem:[#allocation7 + $0x1c] sm:$0xf]
    %v214 = vld [vmem:[#allocation7 + $0x20] sm:$0xf]
    %v215 = vld [vmem:[#allocation7 + $0x24] sm:$0xf]
    %v216 = vld [vmem:[#allocation7 + $0x28] sm:$0xf]
    %v217 = vld [vmem:[#allocation7 + $0x2c] sm:$0xf]
    %v218 = vld [vmem:[#allocation7 + $0x30] sm:$0xf]
    %v219 = vld [vmem:[#allocation7 + $0x34] sm:$0xf]
    %v220 = vld [vmem:[#allocation7 + $0x38] sm:$0xf]
    %v221 = vld [vmem:[#allocation7 + $0x3c] sm:$0xf]
    %v222 = vld [vmem:[%s4] sm:$0x1]
    %v224 = vlaneseq
    %v225 = vshrl.u32 %v224, 7
    %v226 = vsub.s32 0, %v225
    %v227 = vrot.slane %v222, %v226
    %v245 = vunpack.c.l.b16 %v206
    %v246 = vunpack.c.l.b16 %v207
    %v247 = vunpack.c.l.b16 %v208
    %v248 = vunpack.c.l.b16 %v209
    %v249 = vunpack.c.l.b16 %v210
    %v250 = vunpack.c.l.b16 %v211
    %v251 = vunpack.c.l.b16 %v212
    %v252 = vunpack.c.l.b16 %v213
    %v253 = vunpack.c.l.b16 %v214
    %v254 = vunpack.c.l.b16 %v215
    %v255 = vunpack.c.l.b16 %v216
    %v256 = vunpack.c.l.b16 %v217
    %v257 = vunpack.c.l.b16 %v218
    %v258 = vunpack.c.l.b16 %v219
    %v259 = vunpack.c.l.b16 %v220
    %v260 = vunpack.c.l.b16 %v221
    %v261 = vpack.c.b16 %v246, %v245
    %v262 = vpack.c.b16 %v248, %v247
    %v263 = vpack.c.b16 %v250, %v249
    %v264 = vpack.c.b16 %v252, %v251
    %v265 = vpack.c.b16 %v254, %v253
    %v266 = vpack.c.b16 %v256, %v255
    %v267 = vpack.c.b16 %v258, %v257
    %v268 = vpack.c.b16 %v260, %v259
    %277 = vmatprep.subr.bf16.mxu0 0
    %278 = vmatpush1.bf16.msra.mxu0 %v261
    %279 = vmatprep.subr.bf16.mxu0 0
    %280 = vmatpush1.bf16.msra.mxu0 %v262
    %281 = vmatprep.subr.bf16.mxu0 0
    %282 = vmatpush1.bf16.msra.mxu0 %v263
    %283 = vmatprep.subr.bf16.mxu0 0
    %284 = vmatpush1.bf16.msra.mxu0 %v264
    %285 = vmatprep.subr.bf16.mxu0 0
    %286 = vmatpush1.bf16.msra.mxu0 %v265
    %287 = vmatprep.subr.bf16.mxu0 0
    %288 = vmatpush1.bf16.msra.mxu0 %v266
    %289 = vmatprep.subr.bf16.mxu0 0
    %290 = vmatpush1.bf16.msra.mxu0 %v267
    %291 = vmatprep.subr.bf16.mxu0 0
    %292 = vmatpush1.bf16.msra.mxu0 %v268
    %293 = vmatprep.subr.bf16.mxu0 0
    %294 = vmatpush1.bf16.msra.mxu0 0
    %295 = vmatprep.subr.bf16.mxu0 0
    %296 = vmatpush1.bf16.msra.mxu0 0
    %297 = vmatprep.subr.bf16.mxu0 0
    %298 = vmatpush1.bf16.msra.mxu0 0
    %299 = vmatprep.subr.bf16.mxu0 0
    %300 = vmatpush1.bf16.msra.mxu0 0
    %301 = vmatprep.subr.bf16.mxu0 0
    %302 = vmatpush1.bf16.msra.mxu0 0
    %303 = vmatprep.subr.bf16.mxu0 0
    %304 = vmatpush1.bf16.msra.mxu0 0
    %305 = vmatprep.subr.bf16.mxu0 0
    %306 = vmatpush1.bf16.msra.mxu0 0
    %307 = vmatprep.subr.bf16.mxu0 0
    %308 = vmatpush1.bf16.msra.mxu0 0
    %309 = vmatprep.mubr.bf16.mxu0 0
    %310 = vmatmul.mubr.bf16.gmra.mrb[0].mxu0 %v205
    %v311 = vpop.f32.mrb[0].mxu0
    %v312 = vadd.f32 %v227, %v311
    %v313 = vpop.f32.mrb[0].mxu0
    %v314 = vpop.f32.mrb[0].mxu0
    %v315 = vadd.f32 %v227, %v314
    %v316 = vpop.f32.mrb[0].mxu0
    %317 = vdwg.mxu0
    %v318 = vmax.f32 %v312, 0.0
    %v319 = vmax.f32 %v315, 0.0
    %v320 = vpack.c.bf16 %v319, %v318
    %v321 = vld [vmem:[#allocation8] sm:$0xf]
    %v322 = vld [vmem:[#allocation8 + $0x4] sm:$0xf]
    %v323 = vld [vmem:[#allocation8 + $0x8] sm:$0xf]
    %v324 = vld [vmem:[#allocation8 + $0xc] sm:$0xf]
    %v325 = vld [vmem:[#allocation8 + $0x10] sm:$0xf]
    %v326 = vld [vmem:[#allocation8 + $0x14] sm:$0xf]
    %v327 = vld [vmem:[#allocation8 + $0x18] sm:$0xf]
    %v328 = vld [vmem:[#allocation8 + $0x1c] sm:$0xf]
    %v329 = vld [vmem:[#allocation8 + $0x20] sm:$0xf]
    %v330 = vld [vmem:[#allocation8 + $0x24] sm:$0xf]
    %v331 = vld [vmem:[#allocation8 + $0x28] sm:$0xf]
    %v332 = vld [vmem:[#allocation8 + $0x2c] sm:$0xf]
    %v333 = vld [vmem:[#allocation8 + $0x30] sm:$0xf]
    %v334 = vld [vmem:[#allocation8 + $0x34] sm:$0xf]
    %v335 = vld [vmem:[#allocation8 + $0x38] sm:$0xf]
    %v336 = vld [vmem:[#allocation8 + $0x3c] sm:$0xf]
    %v337 = vld [vmem:[%s6] sm:$0x1]
    %v339 = vlaneseq
    %v340 = vshrl.u32 %v339, 7
    %v341 = vsub.s32 0, %v340
    %v342 = vrot.slane %v337, %v341
    %v360 = vunpack.c.l.b16 %v321
    %v361 = vunpack.c.l.b16 %v322
    %v362 = vunpack.c.l.b16 %v323
    %v363 = vunpack.c.l.b16 %v324
    %v364 = vunpack.c.l.b16 %v325
    %v365 = vunpack.c.l.b16 %v326
    %v366 = vunpack.c.l.b16 %v327
    %v367 = vunpack.c.l.b16 %v328
    %v368 = vunpack.c.l.b16 %v329
    %v369 = vunpack.c.l.b16 %v330
    %v370 = vunpack.c.l.b16 %v331
    %v371 = vunpack.c.l.b16 %v332
    %v372 = vunpack.c.l.b16 %v333
    %v373 = vunpack.c.l.b16 %v334
    %v374 = vunpack.c.l.b16 %v335
    %v375 = vunpack.c.l.b16 %v336
    %v376 = vpack.c.b16 %v361, %v360
    %v377 = vpack.c.b16 %v363, %v362
    %v378 = vpack.c.b16 %v365, %v364
    %v379 = vpack.c.b16 %v367, %v366
    %v380 = vpack.c.b16 %v369, %v368
    %v381 = vpack.c.b16 %v371, %v370
    %v382 = vpack.c.b16 %v373, %v372
    %v383 = vpack.c.b16 %v375, %v374
    %392 = vmatprep.subr.bf16.mxu0 0
    %393 = vmatpush1.bf16.msra.mxu0 %v376
    %394 = vmatprep.subr.bf16.mxu0 0
    %395 = vmatpush1.bf16.msra.mxu0 %v377
    %396 = vmatprep.subr.bf16.mxu0 0
    %397 = vmatpush1.bf16.msra.mxu0 %v378
    %398 = vmatprep.subr.bf16.mxu0 0
    %399 = vmatpush1.bf16.msra.mxu0 %v379
    %400 = vmatprep.subr.bf16.mxu0 0
    %401 = vmatpush1.bf16.msra.mxu0 %v380
    %402 = vmatprep.subr.bf16.mxu0 0
    %403 = vmatpush1.bf16.msra.mxu0 %v381
    %404 = vmatprep.subr.bf16.mxu0 0
    %405 = vmatpush1.bf16.msra.mxu0 %v382
    %406 = vmatprep.subr.bf16.mxu0 0
    %407 = vmatpush1.bf16.msra.mxu0 %v383
    %408 = vmatprep.subr.bf16.mxu0 0
    %409 = vmatpush1.bf16.msra.mxu0 0
    %410 = vmatprep.subr.bf16.mxu0 0
    %411 = vmatpush1.bf16.msra.mxu0 0
    %412 = vmatprep.subr.bf16.mxu0 0
    %413 = vmatpush1.bf16.msra.mxu0 0
    %414 = vmatprep.subr.bf16.mxu0 0
    %415 = vmatpush1.bf16.msra.mxu0 0
    %416 = vmatprep.subr.bf16.mxu0 0
    %417 = vmatpush1.bf16.msra.mxu0 0
    %418 = vmatprep.subr.bf16.mxu0 0
    %419 = vmatpush1.bf16.msra.mxu0 0
    %420 = vmatprep.subr.bf16.mxu0 0
    %421 = vmatpush1.bf16.msra.mxu0 0
    %422 = vmatprep.subr.bf16.mxu0 0
    %423 = vmatpush1.bf16.msra.mxu0 0
    %424 = vmatprep.mubr.bf16.mxu0 0
    %425 = vmatmul.mubr.bf16.gmra.mrb[0].mxu0 %v320
    %v426 = vpop.f32.mrb[0].mxu0
    %v427 = vadd.f32 %v342, %v426
    %v428 = vpop.f32.mrb[0].mxu0
    %v429 = vpop.f32.mrb[0].mxu0
    %v430 = vadd.f32 %v342, %v429
    %v431 = vpop.f32.mrb[0].mxu0
    %432 = vdwg.mxu0
    %433 = vst [vmem:[#allocation10] sm:$0xff] %v427
    %434 = vst [vmem:[#allocation10 + $0x8] sm:$0xff] %v430
    // Predicated region
    $region46: #{tpu_custom_call.1} parent=1 // pred_check
      _
    $region47: #{tpu_custom_call.1} parent=1 // pred_check_branch
      %436 = sbr.rel (0) target = $region49
    $region48: #{tpu_custom_call.1} parent=1 // pred_region
      %s438 = ssub.s32 256, 256
      %439 = vsyncadd [#allocation4], %s438
      %s440 = sshll.u32 [#allocation10], 4
      %s441 = int_to_ptr.vmem [resolvable:$true] %s440
      %446 = dma.vmem_to_hbm [thread:$0]  %s441, 256, %s7, [#allocation4], 128, 128, 8
    $region49: #{tpu_custom_call.1} parent=1 // pred_fallthru
      _
    // Predicated region
    $region50: #{tpu_custom_call.1} parent=1 // pred_check
      _
    $region51: #{tpu_custom_call.1} parent=1 // pred_check_branch
      %448 = sbr.rel (0) target = $region53
    $region52: #{tpu_custom_call.1} parent=1 // pred_region
      %449 = dma.done [#allocation4], 256
    $region53: #{tpu_custom_call.1} parent=1 // pred_fallthru
      _
    %450 = vsyncpa [#allocation3], 1
    %451 = vsyncpa [#allocation6], 1
    %452 = vsyncpa [#allocation9], 1
    %453 = vsyncpa [#allocation4], 1

</llo_original>
